<compile_context>
chip_gen: v7x
topology: tpu7x:2x2x1
jax: 0.10.0
libtpu: 0.0.40
codegen_flags: <defaults>
</compile_context>

<pallas_src>
import numpy as np
import jax
import jax.numpy as jnp
from jax.experimental import pallas as pl
from jax.experimental.pallas import tpu as pltpu


# --------------------------------------------------------------------------- #
# fused forward pass
# --------------------------------------------------------------------------- #
def simple_conv_net_forward(x_nchw, params, *, compute_dtype=jnp.bfloat16):
    """Forward matching the PyTorch SimpleConvNet (NCHW in / NCHW out)."""
    w1, b1, w2, b2 = params
    B, C_in, H, W = x_nchw.shape
    C1, _, KH1, KW1 = w1.shape            # (16, C_in, 8, 8)
    C2, _, KH2, KW2 = w2.shape            # (32, C1, 4, 4)
    S1, S2 = 4, 2                         # strides from the nn.Module
    H1, W1o = (H - KH1) // S1 + 1, (W - KW1) // S1 + 1      # conv1 output HxW
    H2, W2o = (H1 - KH2) // S2 + 1, (W1o - KW2) // S2 + 1   # conv2 output HxW
    assert KH2 == 4 and KW2 == 4 and S2 == 2, "kernel assumes conv2 = k4/s2"
    assert H1 % 2 == 0 and W1o % 2 == 0

    GH, GW = H1 // 2, W1o // 2            # space-to-depth grid of conv1 output
    R = GH * GW                           # conv2 GEMM rows per batch (padded grid)
    RP = R + 8                            # scratch rows (covers max shift GW+1)
    K1 = KH1 * KW1 * C_in                 # conv1 GEMM depth (192)
    K2 = 16 * C1                          # conv2 GEMM depth (2x2 taps * 2x2 parity * C1)

    # ---- host prologue ------------------------------------------------------
    # conv1 im2col with rows ordered (b | g=(dh,dw), i, j) so the conv1 GEMM
    # output comes out already space-to-depth'd: output pixel (h',w')=(2i+dh,2j+dw).
    g = np.arange(4)
    dh, dw = g // 2, g % 2
    hco = (2 * S1) * np.arange(GH)[None, :, None] + S1 * dh[:, None, None] \
        + np.arange(KH1)[None, None, :]                       # (4, GH, KH1)
    wco = (2 * S1) * np.arange(GW)[None, :, None] + S1 * dw[:, None, None] \
        + np.arange(KW1)[None, None, :]                       # (4, GW, KW1)
    hidx = jnp.asarray(hco)[:, :, None, :, None]              # (4, GH, 1, KH1, 1)
    widx = jnp.asarray(wco)[:, None, :, None, :]              # (4, 1, GW, 1, KW1)
    pat = x_nchw[:, :, hidx, widx]                            # (B, C, 4, GH, GW, KH1, KW1)
    p1 = jnp.transpose(pat, (0, 2, 3, 4, 5, 6, 1))            # (B, 4, GH, GW, KH1, KW1, C)
    p1 = p1.reshape(B, 4 * R, K1).astype(compute_dtype)

    # GEMM weights. conv1: K ordered (kh, kw, ci).
    # conv2: K ordered (ki, kj, dh, dw, ci) with kh = 2*ki+dh, kw = 2*kj+dw.
    w1g = jnp.transpose(w1, (2, 3, 1, 0)).reshape(K1, C1).astype(compute_dtype)
    w2g = jnp.transpose(w2.reshape(C2, C1, 2, 2, 2, 2),
                        (2, 4, 3, 5, 1, 0)).reshape(K2, C2).astype(compute_dtype)
    b1r = b1.reshape(1, C1).astype(jnp.float32)
    b2r = b2.reshape(1, C2).astype(jnp.float32)

    # ---- fused kernel (one batch element per grid step) ---------------------
    def fused_kernel(p1_ref, w1_ref, b1_ref, w2_ref, b2_ref, o_ref, hs_ref):
        # conv1: ONE GEMM (4R, K1) @ (K1, C1); bf16 operands, f32 accumulation.
        h1 = jnp.dot(p1_ref[0], w1_ref[...], preferred_element_type=jnp.float32)
        h1 = jnp.maximum(h1 + b1_ref[...], 0.0)            # f32 bias + ReLU (VPU)

        # space-to-depth: parity group g=(dh,dw) -> lane block g of the scratch.
        for gg in range(4):
            hs_ref[0:R, gg * C1:(gg + 1) * C1] = h1[gg * R:(gg + 1) * R, :]
        hs_ref[R:RP, :] = jnp.zeros((RP - R, 4 * C1), jnp.float32)

        # conv2 im2col: the k4/s2 conv over conv1's output equals a k2/s1 conv
        # over the (GH, GW) grid -> 4 static shifted views, lane-concatenated.
        p2 = jnp.concatenate(
            [hs_ref[0:R, :],                  # (ki, kj) = (0, 0)
             hs_ref[1:R + 1, :],              # (0, 1)
             hs_ref[GW:GW + R, :],            # (1, 0)
             hs_ref[GW + 1:GW + 1 + R, :]],   # (1, 1)
            axis=1).astype(compute_dtype)     # (R, K2) = (16, 256)

        # conv2: ONE GEMM (R, K2) @ (K2, C2). Rows with i==GH-1 or j==GW-1 are
        # padding and are sliced away on the host.
        out = jnp.dot(p2, w2_ref[...], preferred_element_type=jnp.float32)
        o_ref[0] = jnp.maximum(out + b2_ref[...], 0.0)

    vmem_spec = pl.BlockSpec(memory_space=pltpu.MemorySpace.VMEM)
    out_pad = pl.pallas_call(
        fused_kernel,
        out_shape=jax.ShapeDtypeStruct((B, R, C2), jnp.float32),
        grid=(B,),
        in_specs=[
            pl.BlockSpec((1, 4 * R, K1), lambda b: (b, 0, 0)),   # per-batch patches
            vmem_spec,                                            # w1g  (resident)
            vmem_spec,                                            # b1
            vmem_spec,                                            # w2g
            vmem_spec,                                            # b2
        ],
        out_specs=pl.BlockSpec((1, R, C2), lambda b: (b, 0, 0)),
        scratch_shapes=[pltpu.VMEM((RP, 4 * C1), jnp.float32)],
        compiler_params=pltpu.CompilerParams(
            dimension_semantics=("parallel",),       # both TCs on v7x as B grows
            vmem_limit_bytes=32 * 1024 * 1024),      # explicit, fits v7x's 64 MiB
    )(p1, w1g, b1r, w2g, b2r)

    # ---- host epilogue: drop padded grid rows, (B,GH,GW,C2) -> NCHW ---------
    out = out_pad.reshape(B, GH, GW, C2)[:, :H2, :W2o, :]
    return jnp.transpose(out, (0, 3, 1, 2))


# --------------------------------------------------------------------------- #
# pure-JAX reference (semantics of the PyTorch module)
# --------------------------------------------------------------------------- #
def ref_forward(x, params):
    w1, b1, w2, b2 = params
    dn = ("NCHW", "OIHW", "NCHW")
    y = jax.lax.conv_general_dilated(x, w1, (4, 4), "VALID", dimension_numbers=dn)
    y = jnp.maximum(y + b1[None, :, None, None], 0.0)
    y = jax.lax.conv_general_dilated(y, w2, (2, 2), "VALID", dimension_numbers=dn)
    return jnp.maximum(y + b2[None, :, None, None], 0.0)


if __name__ == "__main__":
    key = jax.random.PRNGKey(0)
    kx, k1, k2, k3, k4 = jax.random.split(key, 5)

    B, C_in, H, W = 2, 3, 36, 36                 # -> conv1: 8x8, conv2: 3x3
    x = jax.random.normal(kx, (B, C_in, H, W), dtype=jnp.float32)

    # Deterministic synthetic parameters (shapes from the nn.Module __init__)
    w1 = 0.05 * jax.random.normal(k1, (16, C_in, 8, 8), dtype=jnp.float32)
    b1 = 0.05 * jax.random.normal(k2, (16,), dtype=jnp.float32)
    w2 = 0.05 * jax.random.normal(k3, (32, 16, 4, 4), dtype=jnp.float32)
    b2 = 0.05 * jax.random.normal(k4, (32,), dtype=jnp.float32)
    params = (w1, b1, w2, b2)

    fwd = jax.jit(simple_conv_net_forward)
    out = jax.block_until_ready(fwd(x, params))
    assert out.shape == (B, 32, 3, 3), out.shape

    ref = jax.block_until_ready(jax.jit(ref_forward)(x, params))
    # bf16 MXU operands with f32 accumulation -> bf16-level tolerance
    max_err = float(jnp.max(jnp.abs(out - ref)))
    assert jnp.allclose(out, ref, atol=2e-2, rtol=2e-2), max_err

    print("KERNEL_OK")
</pallas_src>

<mosaic_0001>
module attributes {stable_mosaic.version = 11 : i64} {
  func.func @fused_kernel(%arg0: i32, %arg1: memref<1x64x192xbf16, #tpu.memory_space<vmem>>, %arg2: memref<192x16xbf16, #tpu.memory_space<vmem>>, %arg3: memref<1x16xf32, #tpu.memory_space<vmem>>, %arg4: memref<256x32xbf16, #tpu.memory_space<vmem>>, %arg5: memref<1x32xf32, #tpu.memory_space<vmem>>, %arg6: memref<1x16x32xf32, #tpu.memory_space<vmem>>, %arg7: memref<24x64xf32, #tpu.memory_space<vmem>>) attributes {dimension_semantics = [#tpu.dimension_semantics<parallel>], iteration_bounds = array<i64: 2>, scalar_prefetch = 0 : i64, scratch_operands = 1 : i64, tpu.core_type = #tpu.core_type<tc>, window_params = [{transform_indices = @transform_0, window_bounds = array<i64: 1, 64, 192>}, {pipeline_mode = #tpu.pipeline_mode<synchronous>, transform_indices = @transform_1, window_bounds = array<i64: 192, 16>}, {pipeline_mode = #tpu.pipeline_mode<synchronous>, transform_indices = @transform_2, window_bounds = array<i64: 1, 16>}, {pipeline_mode = #tpu.pipeline_mode<synchronous>, transform_indices = @transform_3, window_bounds = array<i64: 256, 32>}, {pipeline_mode = #tpu.pipeline_mode<synchronous>, transform_indices = @transform_4, window_bounds = array<i64: 1, 32>}, {transform_indices = @transform_5, window_bounds = array<i64: 1, 16, 32>}]} {
    %c0 = arith.constant 0 : index
    %c0_0 = arith.constant 0 : index
    %c0_1 = arith.constant 0 : index
    %0 = vector.load %arg1[%c0, %c0_0, %c0_1] : memref<1x64x192xbf16, #tpu.memory_space<vmem>>, vector<1x64x192xbf16>
    %1 = vector.shape_cast %0 : vector<1x64x192xbf16> to vector<64x192xbf16>
    %c0_2 = arith.constant 0 : index
    %c0_3 = arith.constant 0 : index
    %2 = vector.load %arg2[%c0_2, %c0_3] : memref<192x16xbf16, #tpu.memory_space<vmem>>, vector<192x16xbf16>
    %cst = arith.constant dense<0.000000e+00> : vector<64x16xf32>
    %3 = tpu.matmul %1, %2, %cst {dimension_numbers = #tpu.dot_dimension_numbers<[1], [0], [0], [1], [0, 0, 1, 1], [], []>} : vector<64x192xbf16>, vector<192x16xbf16>, vector<64x16xf32> -> vector<64x16xf32>
    %c0_4 = arith.constant 0 : index
    %c0_5 = arith.constant 0 : index
    %4 = vector.load %arg3[%c0_4, %c0_5] : memref<1x16xf32, #tpu.memory_space<vmem>>, vector<1x16xf32>
    %5 = vector.broadcast %4 : vector<1x16xf32> to vector<64x16xf32>
    %6 = arith.addf %3, %5 : vector<64x16xf32>
    %cst_6 = arith.constant 0.000000e+00 : f32
    %7 = vector.broadcast %cst_6 : f32 to vector<64x16xf32>
    %8 = arith.maximumf %6, %7 : vector<64x16xf32>
    %9 = vector.extract_strided_slice %8 {offsets = [0, 0], sizes = [16, 16], strides = [1, 1]} : vector<64x16xf32> to vector<16x16xf32>
    %c0_7 = arith.constant 0 : index
    %c0_8 = arith.constant 0 : index
    %10 = vector.load %arg7[%c0_7, %c0_8] : memref<24x64xf32, #tpu.memory_space<vmem>>, vector<16x16xf32>
    tpu.vector_store %arg7[%c0_7, %c0_8], %9 {strides = array<i32>} : memref<24x64xf32, #tpu.memory_space<vmem>>, vector<16x16xf32>,
    %11 = vector.extract_strided_slice %8 {offsets = [16, 0], sizes = [16, 16], strides = [1, 1]} : vector<64x16xf32> to vector<16x16xf32>
    %c0_9 = arith.constant 0 : index
    %c16 = arith.constant 16 : index
    %12 = vector.load %arg7[%c0_9, %c16] : memref<24x64xf32, #tpu.memory_space<vmem>>, vector<16x16xf32>
    tpu.vector_store %arg7[%c0_9, %c16], %11 {strides = array<i32>} : memref<24x64xf32, #tpu.memory_space<vmem>>, vector<16x16xf32>,
    %13 = vector.extract_strided_slice %8 {offsets = [32, 0], sizes = [16, 16], strides = [1, 1]} : vector<64x16xf32> to vector<16x16xf32>
    %c0_10 = arith.constant 0 : index
    %c32 = arith.constant 32 : index
    %14 = vector.load %arg7[%c0_10, %c32] : memref<24x64xf32, #tpu.memory_space<vmem>>, vector<16x16xf32>
    tpu.vector_store %arg7[%c0_10, %c32], %13 {strides = array<i32>} : memref<24x64xf32, #tpu.memory_space<vmem>>, vector<16x16xf32>,
    %15 = vector.extract_strided_slice %8 {offsets = [48, 0], sizes = [16, 16], strides = [1, 1]} : vector<64x16xf32> to vector<16x16xf32>
    %c0_11 = arith.constant 0 : index
    %c48 = arith.constant 48 : index
    %16 = vector.load %arg7[%c0_11, %c48] : memref<24x64xf32, #tpu.memory_space<vmem>>, vector<16x16xf32>
    tpu.vector_store %arg7[%c0_11, %c48], %15 {strides = array<i32>} : memref<24x64xf32, #tpu.memory_space<vmem>>, vector<16x16xf32>,
    %cst_12 = arith.constant 0.000000e+00 : f32
    %17 = vector.broadcast %cst_12 : f32 to vector<8x64xf32>
    %c16_13 = arith.constant 16 : index
    %c0_14 = arith.constant 0 : index
    %18 = vector.load %arg7[%c16_13, %c0_14] : memref<24x64xf32, #tpu.memory_space<vmem>>, vector<8x64xf32>
    tpu.vector_store %arg7[%c16_13, %c0_14], %17 {strides = array<i32>} : memref<24x64xf32, #tpu.memory_space<vmem>>, vector<8x64xf32>,
    %c0_15 = arith.constant 0 : index
    %c0_16 = arith.constant 0 : index
    %19 = vector.load %arg7[%c0_15, %c0_16] : memref<24x64xf32, #tpu.memory_space<vmem>>, vector<16x64xf32>
    %c1 = arith.constant 1 : index
    %c0_17 = arith.constant 0 : index
    %20 = vector.load %arg7[%c1, %c0_17] : memref<24x64xf32, #tpu.memory_space<vmem>>, vector<16x64xf32>
    %c4 = arith.constant 4 : index
    %c0_18 = arith.constant 0 : index
    %21 = vector.load %arg7[%c4, %c0_18] : memref<24x64xf32, #tpu.memory_space<vmem>>, vector<16x64xf32>
    %c5 = arith.constant 5 : index
    %c0_19 = arith.constant 0 : index
    %22 = vector.load %arg7[%c5, %c0_19] : memref<24x64xf32, #tpu.memory_space<vmem>>, vector<16x64xf32>
    %23 = tpu.concatenate %19, %20, %21, %22 in 1 : vector<16x64xf32>, vector<16x64xf32>, vector<16x64xf32>, vector<16x64xf32> -> vector<16x256xf32>
    %24 = arith.truncf %23 : vector<16x256xf32> to vector<16x256xbf16>
    %c0_20 = arith.constant 0 : index
    %c0_21 = arith.constant 0 : index
    %25 = vector.load %arg4[%c0_20, %c0_21] : memref<256x32xbf16, #tpu.memory_space<vmem>>, vector<256x32xbf16>
    %cst_22 = arith.constant dense<0.000000e+00> : vector<16x32xf32>
    %26 = tpu.matmul %24, %25, %cst_22 {dimension_numbers = #tpu.dot_dimension_numbers<[1], [0], [0], [1], [0, 0, 1, 1], [], []>} : vector<16x256xbf16>, vector<256x32xbf16>, vector<16x32xf32> -> vector<16x32xf32>
    %c0_23 = arith.constant 0 : index
    %c0_24 = arith.constant 0 : index
    %27 = vector.load %arg5[%c0_23, %c0_24] : memref<1x32xf32, #tpu.memory_space<vmem>>, vector<1x32xf32>
    %28 = vector.broadcast %27 : vector<1x32xf32> to vector<16x32xf32>
    %29 = arith.addf %26, %28 : vector<16x32xf32>
    %cst_25 = arith.constant 0.000000e+00 : f32
    %30 = vector.broadcast %cst_25 : f32 to vector<16x32xf32>
    %31 = arith.maximumf %29, %30 : vector<16x32xf32>
    %c0_26 = arith.constant 0 : index
    %c0_27 = arith.constant 0 : index
    %c0_28 = arith.constant 0 : index
    %32 = vector.load %arg6[%c0_26, %c0_27, %c0_28] : memref<1x16x32xf32, #tpu.memory_space<vmem>>, vector<1x16x32xf32>
    %33 = vector.shape_cast %32 : vector<1x16x32xf32> to vector<16x32xf32>
    %34 = vector.shape_cast %31 : vector<16x32xf32> to vector<1x16x32xf32>
    tpu.vector_store %arg6[%c0_26, %c0_27, %c0_28], %34 {strides = array<i32>} : memref<1x16x32xf32, #tpu.memory_space<vmem>>, vector<1x16x32xf32>,
    return
  }
  func.func @transform_0(%arg0: i32) -> (i32, i32, i32) {
    %c0_i32 = arith.constant 0 : i32
    %c0_i32_0 = arith.constant 0 : i32
    %c0_i32_1 = arith.constant 0 : i32
    return %arg0, %c0_i32, %c0_i32_0 : i32, i32, i32
  }
  func.func @transform_1(%arg0: i32) -> (i32, i32) {
    %c0_i32 = arith.constant 0 : i32
    %c0_i32_0 = arith.constant 0 : i32
    %c0_i32_1 = arith.constant 0 : i32
    return %c0_i32, %c0_i32_0 : i32, i32
  }
  func.func @transform_2(%arg0: i32) -> (i32, i32) {
    %c0_i32 = arith.constant 0 : i32
    %c0_i32_0 = arith.constant 0 : i32
    %c0_i32_1 = arith.constant 0 : i32
    return %c0_i32, %c0_i32_0 : i32, i32
  }
  func.func @transform_3(%arg0: i32) -> (i32, i32) {
    %c0_i32 = arith.constant 0 : i32
    %c0_i32_0 = arith.constant 0 : i32
    %c0_i32_1 = arith.constant 0 : i32
    return %c0_i32, %c0_i32_0 : i32, i32
  }
  func.func @transform_4(%arg0: i32) -> (i32, i32) {
    %c0_i32 = arith.constant 0 : i32
    %c0_i32_0 = arith.constant 0 : i32
    %c0_i32_1 = arith.constant 0 : i32
    return %c0_i32, %c0_i32_0 : i32, i32
  }
  func.func @transform_5(%arg0: i32) -> (i32, i32, i32) {
    %c0_i32 = arith.constant 0 : i32
    %c0_i32_0 = arith.constant 0 : i32
    %c0_i32_1 = arith.constant 0 : i32
    return %arg0, %c0_i32, %c0_i32_0 : i32, i32, i32
  }
}

</mosaic_0001>

<llo_original>
// kernel: simple_conv_net_forward.1
$region0: #{simple_conv_net_forward.1}
  #allocation0 [shape = 'u32[]', space=smem, size = 0x4, offset = 0x4, fixed_abs, tag = 'smem constant byte address 0x4 - core index']
  #allocation1 [shape = 'u32[144,128]{1,0:T(1,128)}', space=vmem, size = 0x12000, scoped, tag = 'internal scratch']
  #allocation2 [shape = 'f32[24,64]{1,0:T(8,128)}', space=vmem, size = 0x3000, scoped, tag = 'scratch operand']
  %s0 = inlined_call_operand.vmem [shape: bf16[2,64,192], index: 0, kind: input, shape index: {}]
  %s1 = inlined_call_operand.vmem [shape: bf16[192,16], index: 1, kind: input, shape index: {}]
  %s2 = inlined_call_operand.vmem [shape: f32[1,16], index: 2, kind: input, shape index: {}]
  %s3 = inlined_call_operand.vmem [shape: bf16[256,32], index: 3, kind: input, shape index: {}]
  %s4 = inlined_call_operand.vmem [shape: f32[1,32], index: 4, kind: input, shape index: {}]
  %s5 = inlined_call_operand.vmem [shape: f32[2,16,32], index: 5, kind: output, shape index: {}]
  %s6 = sld [smem:[#allocation0]]
  $region53: #{simple_conv_net_forward.1} parent=0
    _
  %s8 = ssub.s32 1, %s6
  %s9 = scalar_select 0, %s8, %s6
  loop: start=0, step=1, limit=4
  $region2: #{simple_conv_net_forward.1} parent=0 // loop_pre_header
    _
  $region3: #{simple_conv_net_forward.1} parent=0 // loop_header
    %s11 = sphi 0, %s15
    %p12 = scmp.ge.s32.totalorder %s11, 4
    %s21 = sphi 0, %s23
    %s24 = sphi 0, %s21
    %s25 = sphi 0, %s24
    %s41 = sphi 0, %s25
    %s45 = sphi 0, %s45
    %s47 = sphi 0, %s45
    %s48 = sphi 0, %s47
    %s62 = sphi 0, %s48
    %s66 = sphi 0, %s66
    %s68 = sphi 0, %s66
    %s69 = sphi 0, %s68
    %s83 = sphi 0, %s69
    %s87 = sphi 0, %s87
    %s89 = sphi 0, %s87
    %s90 = sphi 0, %s89
    %s104 = sphi 0, %s90
    %s108 = sphi 0, %s108
    %s110 = sphi 0, %s108
    %s111 = sphi 0, %s110
    %s125 = sphi 0, %s111
    %s131 = sphi 0, %s133
    %s134 = sphi 0, %s131
    %s135 = sphi 0, %s134
    %s151 = sphi 0, %s135
  $region4: #{simple_conv_net_forward.1} parent=0 // loop_header_branch
    %14 = sbr.rel (%p12) target = $region8
  $region5: #{simple_conv_net_forward.1} parent=0 // loop_body
    %s16 = ssub.s32 %s11, 1
    %s17 = ssub.s32 %s11, 2
    %s18 = sadd.s32 %s11, 1
    %s19 = ssub.s32 %s11, %s18
    %p20 = scmp.eq.s32.totalorder %s19, 0
    %s22 = sadd.s32 %s21, 1
    %s23 = scalar_select %p20, %s21, %s22
    %p26 = pneg %p20
    %p27 = scmp.eq.s32.totalorder %s11, 1
    %p28 = por %p26, %p27
    %p29 = scmp.ne.s32.totalorder %s21, %s24
    %p30 = scmp.eq.s32.totalorder %s11, 0
    %p31 = por %p29, %p30
    %p32 = scmp.ne.s32.totalorder %s21, %s24
    %p33 = scmp.eq.s32.totalorder %s16, 1
    %p34 = por %p32, %p33
    %p35 = scmp.ne.s32.totalorder %s24, %s25
    %p36 = scmp.eq.s32.totalorder %s16, 0
    %p37 = por %p35, %p36
    %p38 = scmp.ne.s32.totalorder %s24, %s25
    %p39 = scmp.eq.s32.totalorder %s17, 1
    %p40 = por %p38, %p39
    %p42 = scmp.ne.s32.totalorder %s25, %s41
    %p43 = scmp.eq.s32.totalorder %s17, 0
    %p44 = por %p42, %p43
    %s46 = sadd.s32 %s45, 1
    %p49 = scmp.eq.s32.totalorder %s11, 1
    %p50 = scmp.ne.s32.totalorder %s45, %s47
    %p51 = scmp.eq.s32.totalorder %s11, 0
    %p52 = por %p50, %p51
    %p53 = scmp.ne.s32.totalorder %s45, %s47
    %p54 = scmp.eq.s32.totalorder %s16, 1
    %p55 = por %p53, %p54
    %p56 = scmp.ne.s32.totalorder %s47, %s48
    %p57 = scmp.eq.s32.totalorder %s16, 0
    %p58 = por %p56, %p57
    %p59 = scmp.ne.s32.totalorder %s47, %s48
    %p60 = scmp.eq.s32.totalorder %s17, 1
    %p61 = por %p59, %p60
    %p63 = scmp.ne.s32.totalorder %s48, %s62
    %p64 = scmp.eq.s32.totalorder %s17, 0
    %p65 = por %p63, %p64
    %s67 = sadd.s32 %s66, 1
    %p70 = scmp.eq.s32.totalorder %s11, 1
    %p71 = scmp.ne.s32.totalorder %s66, %s68
    %p72 = scmp.eq.s32.totalorder %s11, 0
    %p73 = por %p71, %p72
    %p74 = scmp.ne.s32.totalorder %s66, %s68
    %p75 = scmp.eq.s32.totalorder %s16, 1
    %p76 = por %p74, %p75
    %p77 = scmp.ne.s32.totalorder %s68, %s69
    %p78 = scmp.eq.s32.totalorder %s16, 0
    %p79 = por %p77, %p78
    %p80 = scmp.ne.s32.totalorder %s68, %s69
    %p81 = scmp.eq.s32.totalorder %s17, 1
    %p82 = por %p80, %p81
    %p84 = scmp.ne.s32.totalorder %s69, %s83
    %p85 = scmp.eq.s32.totalorder %s17, 0
    %p86 = por %p84, %p85
    %s88 = sadd.s32 %s87, 1
    %p91 = scmp.eq.s32.totalorder %s11, 1
    %p92 = scmp.ne.s32.totalorder %s87, %s89
    %p93 = scmp.eq.s32.totalorder %s11, 0
    %p94 = por %p92, %p93
    %p95 = scmp.ne.s32.totalorder %s87, %s89
    %p96 = scmp.eq.s32.totalorder %s16, 1
    %p97 = por %p95, %p96
    %p98 = scmp.ne.s32.totalorder %s89, %s90
    %p99 = scmp.eq.s32.totalorder %s16, 0
    %p100 = por %p98, %p99
    %p101 = scmp.ne.s32.totalorder %s89, %s90
    %p102 = scmp.eq.s32.totalorder %s17, 1
    %p103 = por %p101, %p102
    %p105 = scmp.ne.s32.totalorder %s90, %s104
    %p106 = scmp.eq.s32.totalorder %s17, 0
    %p107 = por %p105, %p106
    %s109 = sadd.s32 %s108, 1
    %p112 = scmp.eq.s32.totalorder %s11, 1
    %p113 = scmp.ne.s32.totalorder %s108, %s110
    %p114 = scmp.eq.s32.totalorder %s11, 0
    %p115 = por %p113, %p114
    %p116 = scmp.ne.s32.totalorder %s108, %s110
    %p117 = scmp.eq.s32.totalorder %s16, 1
    %p118 = por %p116, %p117
    %p119 = scmp.ne.s32.totalorder %s110, %s111
    %p120 = scmp.eq.s32.totalorder %s16, 0
    %p121 = por %p119, %p120
    %p122 = scmp.ne.s32.totalorder %s110, %s111
    %p123 = scmp.eq.s32.totalorder %s17, 1
    %p124 = por %p122, %p123
    %p126 = scmp.ne.s32.totalorder %s111, %s125
    %p127 = scmp.eq.s32.totalorder %s17, 0
    %p128 = por %p126, %p127
    %s129 = ssub.s32 %s11, %s18
    %p130 = scmp.eq.s32.totalorder %s129, 0
    %s132 = sadd.s32 %s131, 1
    %s133 = scalar_select %p130, %s131, %s132
    %p136 = pneg %p130
    %p137 = scmp.eq.s32.totalorder %s11, 1
    %p138 = por %p136, %p137
    %p139 = scmp.ne.s32.totalorder %s131, %s134
    %p140 = scmp.eq.s32.totalorder %s11, 0
    %p141 = por %p139, %p140
    %p142 = scmp.ne.s32.totalorder %s131, %s134
    %p143 = scmp.eq.s32.totalorder %s16, 1
    %p144 = por %p142, %p143
    %p145 = scmp.ne.s32.totalorder %s134, %s135
    %p146 = scmp.eq.s32.totalorder %s16, 0
    %p147 = por %p145, %p146
    %p148 = scmp.ne.s32.totalorder %s134, %s135
    %p149 = scmp.eq.s32.totalorder %s17, 1
    %p150 = por %p148, %p149
    %p152 = scmp.ne.s32.totalorder %s135, %s151
    %p153 = scmp.eq.s32.totalorder %s17, 0
    %p154 = por %p152, %p153
    %p155 = scmp.le.s32.totalorder 1, %s11
    %p156 = scmp.lt.s32.totalorder %s11, 3
    %p157 = pnand %p155, %p156
    %p158 = pneg %p157
    // Predicated region
    $region9: #{simple_conv_net_forward.1} parent=5 // pred_check
      _
    $region10: #{simple_conv_net_forward.1} parent=5 // pred_check_branch
      %160 = sbr.rel (%p157) target = $region12
    $region11: #{simple_conv_net_forward.1} parent=5 // pred_region
      %s161 = ssub.s32 %s11, 1
      // Predicated region
      $region13: #{simple_conv_net_forward.1} parent=11 // pred_check
        %p162 = pneg %p58
      $region14: #{simple_conv_net_forward.1} parent=11 // pred_check_branch
        %164 = sbr.rel (%p162) target = $region16
      $region15: #{simple_conv_net_forward.1} parent=11 // pred_region
        _
      $region16: #{simple_conv_net_forward.1} parent=11 // pred_fallthru
        _
      // Predicated region
      $region17: #{simple_conv_net_forward.1} parent=11 // pred_check
        %p165 = pneg %p79
      $region18: #{simple_conv_net_forward.1} parent=11 // pred_check_branch
        %167 = sbr.rel (%p165) target = $region20
      $region19: #{simple_conv_net_forward.1} parent=11 // pred_region
        _
      $region20: #{simple_conv_net_forward.1} parent=11 // pred_fallthru
        _
      // Predicated region
      $region21: #{simple_conv_net_forward.1} parent=11 // pred_check
        %p168 = pneg %p100
      $region22: #{simple_conv_net_forward.1} parent=11 // pred_check_branch
        %170 = sbr.rel (%p168) target = $region24
      $region23: #{simple_conv_net_forward.1} parent=11 // pred_region
        _
      $region24: #{simple_conv_net_forward.1} parent=11 // pred_fallthru
        _
      // Predicated region
      $region25: #{simple_conv_net_forward.1} parent=11 // pred_check
        %p171 = pneg %p121
      $region26: #{simple_conv_net_forward.1} parent=11 // pred_check_branch
        %173 = sbr.rel (%p171) target = $region28
      $region27: #{simple_conv_net_forward.1} parent=11 // pred_region
        _
      $region28: #{simple_conv_net_forward.1} parent=11 // pred_fallthru
        _
    $region12: #{simple_conv_net_forward.1} parent=5 // pred_fallthru
      _
    %p174 = scmp.lt.s32.totalorder %s11, 2
    // Predicated region
    $region29: #{simple_conv_net_forward.1} parent=5 // pred_check
      %p175 = pneg %p174
    $region30: #{simple_conv_net_forward.1} parent=5 // pred_check_branch
      %177 = sbr.rel (%p175) target = $region32
    $region31: #{simple_conv_net_forward.1} parent=5 // pred_region
      // Predicated region
      $region33: #{simple_conv_net_forward.1} parent=31 // pred_check
        %p178 = pneg %p31
      $region34: #{simple_conv_net_forward.1} parent=31 // pred_check_branch
        %180 = sbr.rel (%p178) target = $region36
      $region35: #{simple_conv_net_forward.1} parent=31 // pred_region
        %p181 = scmp.lt.s32.totalorder %s11, 1
        %s182 = scalar_select %p181, %s11, 1
        %s183 = smul.addr %s182, 16
        %s184 = smul.addr %s183, 4
        %s185 = scalar_lea.vmem %s0, %s184
      $region36: #{simple_conv_net_forward.1} parent=31 // pred_fallthru
        _
    $region32: #{simple_conv_net_forward.1} parent=5 // pred_fallthru
      _
    %p186 = scmp.le.s32.totalorder 1, %s11
    %p187 = scmp.lt.s32.totalorder %s11, 3
    %p188 = pnand %p186, %p187
    %p189 = pneg %p188
    // Predicated region
    $region37: #{simple_conv_net_forward.1} parent=5 // pred_check
      _
    $region38: #{simple_conv_net_forward.1} parent=5 // pred_check_branch
      %191 = sbr.rel (%p188) target = $region40
    $region39: #{simple_conv_net_forward.1} parent=5 // pred_region
      %s192 = ssub.s32 %s11, 1
      %p193 = scmp.lt.s32.totalorder %s16, 1
      %s194 = scalar_select %p193, %s16, 1
      %s195 = smul.addr %s194, 16
      %s196 = smul.addr %s195, 4
      %s197 = scalar_lea.vmem %s0, %s196
      %p198 = pneg %p37
      %p199 = pneg %p34
      %p200 = pneg %p58
      %p201 = pneg %p55
      %p202 = pneg %p79
      %p203 = pneg %p76
      %p204 = pneg %p100
      %p205 = pneg %p97
      %p206 = pneg %p121
      %p207 = pneg %p118
      %p208 = pneg %p147
      %p209 = pneg %p144
      %p210 = scmp.lt.s32.totalorder %s16, 1
      %s211 = scalar_select %p210, %s16, 1
      %s212 = smul.addr %s211, 2
      %s213 = smul.addr %s212, 8
      %s214 = scalar_lea.vmem %s5, %s213
      %p215 = scmp.lt.s32.totalorder %s16, 1
      %s216 = scalar_select %p215, %s16, 1
      %s217 = smul.addr %s216, 16
      %s218 = smul.addr %s217, 4
      %s219 = scalar_lea.vmem %s0, %s218
      %p220 = scmp.lt.s32.totalorder %s16, 1
      %s221 = scalar_select %p220, %s16, 1
      %s222 = smul.addr %s221, 2
      %s223 = smul.addr %s222, 8
      %s224 = scalar_lea.vmem %s5, %s223
      %v226 = vld [vmem:[%s219] sm:$0xff]
      %v227 = vld [vmem:[%s219 + $0x8] sm:$0xff]
      %v228 = vld [vmem:[%s219 + $0x10] sm:$0xff]
      %v229 = vld [vmem:[%s219 + $0x18] sm:$0xff]
      %v230 = vld [vmem:[%s219 + $0x20] sm:$0xff]
      %v231 = vld [vmem:[%s219 + $0x28] sm:$0xff]
      %v232 = vld [vmem:[%s219 + $0x30] sm:$0xff]
      %v233 = vld [vmem:[%s219 + $0x38] sm:$0xff]
      %v234 = vld [vmem:[%s1] sm:$0xf]
      %v235 = vld [vmem:[%s1 + $0x4] sm:$0xf]
      %v236 = vld [vmem:[%s1 + $0x8] sm:$0xf]
      %v237 = vld [vmem:[%s1 + $0xc] sm:$0xf]
      %v238 = vld [vmem:[%s1 + $0x10] sm:$0xf]
      %v239 = vld [vmem:[%s1 + $0x14] sm:$0xf]
      %v240 = vld [vmem:[%s1 + $0x18] sm:$0xf]
      %v241 = vld [vmem:[%s1 + $0x1c] sm:$0xf]
      %v242 = vld [vmem:[%s1 + $0x20] sm:$0xf]
      %v243 = vld [vmem:[%s1 + $0x24] sm:$0xf]
      %v244 = vld [vmem:[%s1 + $0x28] sm:$0xf]
      %v245 = vld [vmem:[%s1 + $0x2c] sm:$0xf]
      %v246 = vld [vmem:[%s1 + $0x30] sm:$0xf]
      %v247 = vld [vmem:[%s1 + $0x34] sm:$0xf]
      %v248 = vld [vmem:[%s1 + $0x38] sm:$0xf]
      %v249 = vld [vmem:[%s1 + $0x3c] sm:$0xf]
      %v250 = vld [vmem:[%s1 + $0x40] sm:$0xf]
      %v251 = vld [vmem:[%s1 + $0x44] sm:$0xf]
      %v252 = vld [vmem:[%s1 + $0x48] sm:$0xf]
      %v253 = vld [vmem:[%s1 + $0x4c] sm:$0xf]
      %v254 = vld [vmem:[%s1 + $0x50] sm:$0xf]
      %v255 = vld [vmem:[%s1 + $0x54] sm:$0xf]
      %v256 = vld [vmem:[%s1 + $0x58] sm:$0xf]
      %v257 = vld [vmem:[%s1 + $0x5c] sm:$0xf]
      %v258 = vld [vmem:[%s2] sm:$0x1]
      %v260 = vlaneseq
      %v261 = vshrl.u32 %v260, 7
      %v262 = vsub.s32 0, %v261
      %v263 = vrot.slane %v258, %v262
      %v273 = vunpack.c.l.b16 %v226
      %v274 = vunpack.c.h.b16 %v226
      %v275 = vunpack.c.l.b16 %v227
      %v276 = vunpack.c.h.b16 %v227
      %v277 = vunpack.c.l.b16 %v228
      %v278 = vunpack.c.h.b16 %v228
      %v279 = vunpack.c.l.b16 %v229
      %v280 = vunpack.c.h.b16 %v229
      %v281 = vunpack.c.l.b16 %v230
      %v282 = vunpack.c.h.b16 %v230
      %v283 = vunpack.c.l.b16 %v231
      %v284 = vunpack.c.h.b16 %v231
      %v285 = vunpack.c.l.b16 %v232
      %v286 = vunpack.c.h.b16 %v232
      %v287 = vunpack.c.l.b16 %v233
      %v288 = vunpack.c.h.b16 %v233
      %v289 = vpack.c.b16 %v275, %v273
      %v290 = vpack.c.b16 %v276, %v274
      %v291 = vpack.c.b16 %v279, %v277
      %v292 = vpack.c.b16 %v280, %v278
      %v293 = vpack.c.b16 %v283, %v281
      %v294 = vpack.c.b16 %v284, %v282
      %v295 = vpack.c.b16 %v287, %v285
      %v296 = vpack.c.b16 %v288, %v286
      %v325 = vunpack.c.l.b16 %v234
      %v326 = vunpack.c.l.b16 %v235
      %v327 = vunpack.c.l.b16 %v236
      %v328 = vunpack.c.l.b16 %v237
      %v329 = vunpack.c.l.b16 %v238
      %v330 = vunpack.c.l.b16 %v239
      %v331 = vunpack.c.l.b16 %v240
      %v332 = vunpack.c.l.b16 %v241
      %v333 = vunpack.c.l.b16 %v242
      %v334 = vunpack.c.l.b16 %v243
      %v335 = vunpack.c.l.b16 %v244
      %v336 = vunpack.c.l.b16 %v245
      %v337 = vunpack.c.l.b16 %v246
      %v338 = vunpack.c.l.b16 %v247
      %v339 = vunpack.c.l.b16 %v248
      %v340 = vunpack.c.l.b16 %v249
      %v341 = vunpack.c.l.b16 %v250
      %v342 = vunpack.c.l.b16 %v251
      %v343 = vunpack.c.l.b16 %v252
      %v344 = vunpack.c.l.b16 %v253
      %v345 = vunpack.c.l.b16 %v254
      %v346 = vunpack.c.l.b16 %v255
      %v347 = vunpack.c.l.b16 %v256
      %v348 = vunpack.c.l.b16 %v257
      %v349 = vpack.c.b16 %v326, %v325
      %v350 = vpack.c.b16 %v328, %v327
      %v351 = vpack.c.b16 %v330, %v329
      %v352 = vpack.c.b16 %v332, %v331
      %v353 = vpack.c.b16 %v334, %v333
      %v354 = vpack.c.b16 %v336, %v335
      %v355 = vpack.c.b16 %v338, %v337
      %v356 = vpack.c.b16 %v340, %v339
      %v357 = vpack.c.b16 %v342, %v341
      %v358 = vpack.c.b16 %v344, %v343
      %v359 = vpack.c.b16 %v346, %v345
      %v360 = vpack.c.b16 %v348, %v347
      %vm373 = vcmask 523264
      %v375 = vsel %vm373, %v290, 0
      %v378 = vsel %vm373, %v292, 0
      %v381 = vsel %vm373, %v294, 0
      %v384 = vsel %vm373, %v296, 0
      %386 = vmatprep.subr.bf16.mxu0 0
      %387 = vmatpush1.bf16.msra.mxu0 %v349
      %388 = vmatprep.subr.bf16.mxu0 0
      %389 = vmatpush1.bf16.msra.mxu0 %v350
      %390 = vmatprep.subr.bf16.mxu0 0
      %391 = vmatpush1.bf16.msra.mxu0 %v351
      %392 = vmatprep.subr.bf16.mxu0 0
      %393 = vmatpush1.bf16.msra.mxu0 %v352
      %394 = vmatprep.subr.bf16.mxu0 0
      %395 = vmatpush1.bf16.msra.mxu0 %v353
      %396 = vmatprep.subr.bf16.mxu0 0
      %397 = vmatpush1.bf16.msra.mxu0 %v354
      %398 = vmatprep.subr.bf16.mxu0 0
      %399 = vmatpush1.bf16.msra.mxu0 %v355
      %400 = vmatprep.subr.bf16.mxu0 0
      %401 = vmatpush1.bf16.msra.mxu0 %v356
      %402 = vmatprep.subr.bf16.mxu0 0
      %403 = vmatpush1.bf16.msra.mxu0 %v357
      %404 = vmatprep.subr.bf16.mxu0 0
      %405 = vmatpush1.bf16.msra.mxu0 %v358
      %406 = vmatprep.subr.bf16.mxu0 0
      %407 = vmatpush1.bf16.msra.mxu0 %v359
      %408 = vmatprep.subr.bf16.mxu0 0
      %409 = vmatpush1.bf16.msra.mxu0 %v360
      %410 = vmatprep.subr.bf16.mxu0 0
      %411 = vmatpush1.bf16.msra.mxu0 0
      %412 = vmatprep.subr.bf16.mxu0 0
      %413 = vmatpush1.bf16.msra.mxu0 0
      %414 = vmatprep.subr.bf16.mxu0 0
      %415 = vmatpush1.bf16.msra.mxu0 0
      %416 = vmatprep.subr.bf16.mxu0 0
      %417 = vmatpush1.bf16.msra.mxu0 0
      %418 = vmatprep.mubr.bf16.mxu0 %v375
      %419 = vmatmul.mubr.bf16.gmra.mrb[0].mxu0 %v289
      %v420 = vpop.f32.mrb[0].mxu0
      %v421 = vadd.f32 %v263, %v420
      %v422 = vpop.f32.mrb[0].mxu0
      %v423 = vpop.f32.mrb[0].mxu0
      %v424 = vadd.f32 %v263, %v423
      %v425 = vpop.f32.mrb[0].mxu0
      %426 = vmatprep.mubr.bf16.mxu0 %v378
      %427 = vmatmul.mubr.bf16.gmra.mrb[0].mxu0 %v291
      %v428 = vpop.f32.mrb[0].mxu0
      %v429 = vadd.f32 %v263, %v428
      %v430 = vpop.f32.mrb[0].mxu0
      %v431 = vpop.f32.mrb[0].mxu0
      %v432 = vadd.f32 %v263, %v431
      %v433 = vpop.f32.mrb[0].mxu0
      %434 = vmatprep.mubr.bf16.mxu0 %v381
      %435 = vmatmul.mubr.bf16.gmra.mrb[0].mxu0 %v293
      %v436 = vpop.f32.mrb[0].mxu0
      %v437 = vadd.f32 %v263, %v436
      %v438 = vpop.f32.mrb[0].mxu0
      %v439 = vpop.f32.mrb[0].mxu0
      %v440 = vadd.f32 %v263, %v439
      %v441 = vpop.f32.mrb[0].mxu0
      %442 = vmatprep.mubr.bf16.mxu0 %v384
      %443 = vmatmul.mubr.bf16.gmra.mrb[0].mxu0 %v295
      %v444 = vpop.f32.mrb[0].mxu0
      %v445 = vadd.f32 %v263, %v444
      %v446 = vpop.f32.mrb[0].mxu0
      %v447 = vpop.f32.mrb[0].mxu0
      %v448 = vadd.f32 %v263, %v447
      %v449 = vpop.f32.mrb[0].mxu0
      %450 = vdwg.mxu0
      %v451 = vmax.f32 %v421, 0.0
      %v452 = vmax.f32 %v424, 0.0
      %v453 = vmax.f32 %v429, 0.0
      %v454 = vmax.f32 %v432, 0.0
      %v455 = vmax.f32 %v437, 0.0
      %v456 = vmax.f32 %v440, 0.0
      %v457 = vmax.f32 %v445, 0.0
      %v458 = vmax.f32 %v448, 0.0
      %vm459 = vcmask 130048
      %460 = vst.msk [vmem:[#allocation2] sm:$0xff] %vm459, %v451
      %461 = vst.msk [vmem:[#allocation2 + $0x8] sm:$0xff] %vm459, %v452
      %464 = vrot.lane.b32.xlu0 %v453, 16
      %v465 = vpop.permute.xlu0 %464
      %466 = vrot.lane.b32.xlu0 %v454, 16
      %v467 = vpop.permute.xlu0 %466
      %vm470 = vcmask 261248
      %471 = vst.msk [vmem:[#allocation2] sm:$0xff] %vm470, %v465
      %472 = vst.msk [vmem:[#allocation2 + $0x8] sm:$0xff] %vm470, %v467
      %475 = vrot.lane.b32.xlu0 %v455, 32
      %v476 = vpop.permute.xlu0 %475
      %477 = vrot.lane.b32.xlu0 %v456, 32
      %v478 = vpop.permute.xlu0 %477
      %vm481 = vcmask 392448
      %482 = vst.msk [vmem:[#allocation2] sm:$0xff] %vm481, %v476
      %483 = vst.msk [vmem:[#allocation2 + $0x8] sm:$0xff] %vm481, %v478
      %486 = vrot.lane.b32.xlu0 %v457, 48
      %v487 = vpop.permute.xlu0 %486
      %488 = vrot.lane.b32.xlu0 %v458, 48
      %v489 = vpop.permute.xlu0 %488
      %vm492 = vcmask 523648
      %493 = vst.msk [vmem:[#allocation2] sm:$0xff] %vm492, %v487
      %494 = vst.msk [vmem:[#allocation2 + $0x8] sm:$0xff] %vm492, %v489
      %495 = vst.msk [vmem:[#allocation2 + $0x10] sm:$0xff] %vm373, 0.0
      %v496 = vld [vmem:[#allocation2] sm:$0xff]
      %v497 = vld [vmem:[#allocation2 + $0x8] sm:$0xff]
      %v498 = vld [vmem:[#allocation2 + $0x1] sm:$0xff]
      %v499 = vld [vmem:[#allocation2 + $0x9] sm:$0xff]
      %v500 = vld [vmem:[#allocation2 + $0x4] sm:$0xff]
      %v501 = vld [vmem:[#allocation2 + $0xc] sm:$0xff]
      %v502 = vld [vmem:[#allocation2 + $0x5] sm:$0xff]
      %v503 = vld [vmem:[#allocation2 + $0xd] sm:$0xff]
      %506 = vrot.lane.b32.xlu0 %v498, 64
      %v507 = vpop.permute.xlu0 %506
      %508 = vrot.lane.b32.xlu0 %v499, 64
      %v509 = vpop.permute.xlu0 %508
      %514 = vrot.lane.b32.xlu0 %v502, 64
      %v515 = vpop.permute.xlu0 %514
      %516 = vrot.lane.b32.xlu0 %v503, 64
      %v517 = vpop.permute.xlu0 %516
      %v520 = vsel %vm373, %v496, %v507
      %v521 = vsel %vm373, %v497, %v509
      %v522 = vsel %vm373, %v500, %v515
      %v523 = vsel %vm373, %v501, %v517
      %v524 = vpack.c.bf16 %v521, %v520
      %v525 = vpack.c.bf16 %v523, %v522
      %v526 = vld [vmem:[%s3] sm:$0xf]
      %v527 = vld [vmem:[%s3 + $0x4] sm:$0xf]
      %v528 = vld [vmem:[%s3 + $0x8] sm:$0xf]
      %v529 = vld [vmem:[%s3 + $0xc] sm:$0xf]
      %v530 = vld [vmem:[%s3 + $0x10] sm:$0xf]
      %v531 = vld [vmem:[%s3 + $0x14] sm:$0xf]
      %v532 = vld [vmem:[%s3 + $0x18] sm:$0xf]
      %v533 = vld [vmem:[%s3 + $0x1c] sm:$0xf]
      %v534 = vld [vmem:[%s3 + $0x20] sm:$0xf]
      %v535 = vld [vmem:[%s3 + $0x24] sm:$0xf]
      %v536 = vld [vmem:[%s3 + $0x28] sm:$0xf]
      %v537 = vld [vmem:[%s3 + $0x2c] sm:$0xf]
      %v538 = vld [vmem:[%s3 + $0x30] sm:$0xf]
      %v539 = vld [vmem:[%s3 + $0x34] sm:$0xf]
      %v540 = vld [vmem:[%s3 + $0x38] sm:$0xf]
      %v541 = vld [vmem:[%s3 + $0x3c] sm:$0xf]
      %v542 = vld [vmem:[%s3 + $0x40] sm:$0xf]
      %v543 = vld [vmem:[%s3 + $0x44] sm:$0xf]
      %v544 = vld [vmem:[%s3 + $0x48] sm:$0xf]
      %v545 = vld [vmem:[%s3 + $0x4c] sm:$0xf]
      %v546 = vld [vmem:[%s3 + $0x50] sm:$0xf]
      %v547 = vld [vmem:[%s3 + $0x54] sm:$0xf]
      %v548 = vld [vmem:[%s3 + $0x58] sm:$0xf]
      %v549 = vld [vmem:[%s3 + $0x5c] sm:$0xf]
      %v550 = vld [vmem:[%s3 + $0x60] sm:$0xf]
      %v551 = vld [vmem:[%s3 + $0x64] sm:$0xf]
      %v552 = vld [vmem:[%s3 + $0x68] sm:$0xf]
      %v553 = vld [vmem:[%s3 + $0x6c] sm:$0xf]
      %v554 = vld [vmem:[%s3 + $0x70] sm:$0xf]
      %v555 = vld [vmem:[%s3 + $0x74] sm:$0xf]
      %v556 = vld [vmem:[%s3 + $0x78] sm:$0xf]
      %v557 = vld [vmem:[%s3 + $0x7c] sm:$0xf]
      %v558 = vld [vmem:[%s4] sm:$0x1]
      %v560 = vlaneseq
      %v561 = vshrl.u32 %v560, 7
      %v562 = vsub.s32 0, %v561
      %v563 = vrot.slane %v558, %v562
      %v597 = vunpack.c.l.b16 %v526
      %v598 = vunpack.c.l.b16 %v527
      %v599 = vunpack.c.l.b16 %v528
      %v600 = vunpack.c.l.b16 %v529
      %v601 = vunpack.c.l.b16 %v530
      %v602 = vunpack.c.l.b16 %v531
      %v603 = vunpack.c.l.b16 %v532
      %v604 = vunpack.c.l.b16 %v533
      %v605 = vunpack.c.l.b16 %v534
      %v606 = vunpack.c.l.b16 %v535
      %v607 = vunpack.c.l.b16 %v536
      %v608 = vunpack.c.l.b16 %v537
      %v609 = vunpack.c.l.b16 %v538
      %v610 = vunpack.c.l.b16 %v539
      %v611 = vunpack.c.l.b16 %v540
      %v612 = vunpack.c.l.b16 %v541
      %v613 = vunpack.c.l.b16 %v542
      %v614 = vunpack.c.l.b16 %v543
      %v615 = vunpack.c.l.b16 %v544
      %v616 = vunpack.c.l.b16 %v545
      %v617 = vunpack.c.l.b16 %v546
      %v618 = vunpack.c.l.b16 %v547
      %v619 = vunpack.c.l.b16 %v548
      %v620 = vunpack.c.l.b16 %v549
      %v621 = vunpack.c.l.b16 %v550
      %v622 = vunpack.c.l.b16 %v551
      %v623 = vunpack.c.l.b16 %v552
      %v624 = vunpack.c.l.b16 %v553
      %v625 = vunpack.c.l.b16 %v554
      %v626 = vunpack.c.l.b16 %v555
      %v627 = vunpack.c.l.b16 %v556
      %v628 = vunpack.c.l.b16 %v557
      %v629 = vpack.c.b16 %v598, %v597
      %v630 = vpack.c.b16 %v600, %v599
      %v631 = vpack.c.b16 %v602, %v601
      %v632 = vpack.c.b16 %v604, %v603
      %v633 = vpack.c.b16 %v606, %v605
      %v634 = vpack.c.b16 %v608, %v607
      %v635 = vpack.c.b16 %v610, %v609
      %v636 = vpack.c.b16 %v612, %v611
      %v637 = vpack.c.b16 %v614, %v613
      %v638 = vpack.c.b16 %v616, %v615
      %v639 = vpack.c.b16 %v618, %v617
      %v640 = vpack.c.b16 %v620, %v619
      %v641 = vpack.c.b16 %v622, %v621
      %v642 = vpack.c.b16 %v624, %v623
      %v643 = vpack.c.b16 %v626, %v625
      %v644 = vpack.c.b16 %v628, %v627
      %661 = vmatprep.subr.bf16.mxu0 0
      %662 = vmatpush1.bf16.msra.mxu0 %v629
      %663 = vmatprep.subr.bf16.mxu0 0
      %664 = vmatpush1.bf16.msra.mxu0 %v630
      %665 = vmatprep.subr.bf16.mxu0 0
      %666 = vmatpush1.bf16.msra.mxu0 %v631
      %667 = vmatprep.subr.bf16.mxu0 0
      %668 = vmatpush1.bf16.msra.mxu0 %v632
      %669 = vmatprep.subr.bf16.mxu0 0
      %670 = vmatpush1.bf16.msra.mxu0 %v633
      %671 = vmatprep.subr.bf16.mxu0 0
      %672 = vmatpush1.bf16.msra.mxu0 %v634
      %673 = vmatprep.subr.bf16.mxu0 0
      %674 = vmatpush1.bf16.msra.mxu0 %v635
      %675 = vmatprep.subr.bf16.mxu0 0
      %676 = vmatpush1.bf16.msra.mxu0 %v636
      %677 = vmatprep.subr.bf16.mxu0 0
      %678 = vmatpush1.bf16.msra.mxu0 %v637
      %679 = vmatprep.subr.bf16.mxu0 0
      %680 = vmatpush1.bf16.msra.mxu0 %v638
      %681 = vmatprep.subr.bf16.mxu0 0
      %682 = vmatpush1.bf16.msra.mxu0 %v639
      %683 = vmatprep.subr.bf16.mxu0 0
      %684 = vmatpush1.bf16.msra.mxu0 %v640
      %685 = vmatprep.subr.bf16.mxu0 0
      %686 = vmatpush1.bf16.msra.mxu0 %v641
      %687 = vmatprep.subr.bf16.mxu0 0
      %688 = vmatpush1.bf16.msra.mxu0 %v642
      %689 = vmatprep.subr.bf16.mxu0 0
      %690 = vmatpush1.bf16.msra.mxu0 %v643
      %691 = vmatprep.subr.bf16.mxu0 0
      %692 = vmatpush1.bf16.msra.mxu0 %v644
      %693 = vmatprep.mubr.bf16.mxu0 %v525
      %694 = vmatmul.mubr.bf16.gmra.mrb[0].mxu0 %v524
      %v695 = vpop.f32.mrb[0].mxu0
      %v696 = vadd.f32 %v563, %v695
      %v697 = vpop.f32.mrb[0].mxu0
      %v698 = vpop.f32.mrb[0].mxu0
      %v699 = vadd.f32 %v563, %v698
      %v700 = vpop.f32.mrb[0].mxu0
      %701 = vdwg.mxu0
      %v702 = vmax.f32 %v696, 0.0
      %v703 = vmax.f32 %v699, 0.0
      %vm704 = vcmask 261120
      %705 = vst.msk [vmem:[%s224] sm:$0xff] %vm704, %v702
      %706 = vst.msk [vmem:[%s224 + $0x8] sm:$0xff] %vm704, %v703
      %p707 = scmp.lt.s32.totalorder %s16, 1
      %s708 = scalar_select %p707, %s16, 1
      %s709 = smul.addr %s708, 2
      %s710 = smul.addr %s709, 8
      %s711 = scalar_lea.vmem %s5, %s710
      // Predicated region
      $region41: #{simple_conv_net_forward.1} parent=39 // pred_check
        %p712 = pneg %p144
      $region42: #{simple_conv_net_forward.1} parent=39 // pred_check_branch
        %714 = sbr.rel (%p712) target = $region44
      $region43: #{simple_conv_net_forward.1} parent=39 // pred_region
        _
      $region44: #{simple_conv_net_forward.1} parent=39 // pred_fallthru
        _
    $region40: #{simple_conv_net_forward.1} parent=5 // pred_fallthru
      _
    %p715 = scmp.le.s32.totalorder 2, %s11
    // Predicated region
    $region45: #{simple_conv_net_forward.1} parent=5 // pred_check
      %p716 = pneg %p715
    $region46: #{simple_conv_net_forward.1} parent=5 // pred_check_branch
      %718 = sbr.rel (%p716) target = $region48
    $region47: #{simple_conv_net_forward.1} parent=5 // pred_region
      %s719 = ssub.s32 %s11, 2
      // Predicated region
      $region49: #{simple_conv_net_forward.1} parent=47 // pred_check
        %p720 = pneg %p150
      $region50: #{simple_conv_net_forward.1} parent=47 // pred_check_branch
        %722 = sbr.rel (%p720) target = $region52
      $region51: #{simple_conv_net_forward.1} parent=47 // pred_region
        %p723 = scmp.lt.s32.totalorder %s17, 1
        %s724 = scalar_select %p723, %s17, 1
        %s725 = smul.addr %s724, 2
        %s726 = smul.addr %s725, 8
        %s727 = scalar_lea.vmem %s5, %s726
      $region52: #{simple_conv_net_forward.1} parent=47 // pred_fallthru
        _
    $region48: #{simple_conv_net_forward.1} parent=5 // pred_fallthru
      _
  $region6: #{simple_conv_net_forward.1} parent=0 // loop_footer
    %s15 = sadd.s32 1, %s11
  $region7: #{simple_conv_net_forward.1} parent=0 // loop_footer_branch
    %10 = sbr.rel target = $region3
  $region8: #{simple_conv_net_forward.1} parent=0 // loop_exit
    _

</llo_original>
